<compile_context>
chip_gen: v6e
topology: v6e:2x2x1
jax: 0.10.0
libtpu: 0.0.40
codegen_flags: <defaults>
</compile_context>

<pallas_src>
import functools

import jax
import jax.numpy as jnp
from jax.experimental import pallas as pl
from jax.experimental.pallas import tpu as pltpu


def _npair_loss_kernel(x_ref, out_ref, *, n_neg, total_b, tile_b, needs_mask):
    """One grid step processes `tile_b` npairs straight from the (TB, N, D) tile.

    x_ref   : (TB, N, D) VMEM  — member 0 = anchor, 1 = positive, 2: = negatives
    out_ref : (1, 2)     SMEM  — [sum(dist), sum(wsum)] partials for this tile
    """
    a = x_ref[:, 0, :].astype(jnp.float32)                    # (TB, D)
    p = x_ref[:, 1, :].astype(jnp.float32)                    # (TB, D)

    # a.(n_j - p) = a.n_j - a.p : compute a.p once per tile, then loop over the
    # few negatives so all temporaries stay (TB, D)-sized (pure VPU work plus a
    # lane reduction per negative; no MXU, no (NN, TB, D) buffers).
    ap = jnp.sum(a * p, axis=-1, keepdims=True)               # (TB, 1)
    wsum = jnp.sum(a * a + p * p, axis=-1, keepdims=True)     # (TB, 1)

    expsum = jnp.zeros_like(ap)
    for j in range(n_neg):                                    # short static unroll
        n_j = x_ref[:, 2 + j, :].astype(jnp.float32)          # (TB, D)
        an_j = jnp.sum(a * n_j, axis=-1, keepdims=True)       # (TB, 1)
        expsum = expsum + jnp.exp(an_j - ap)

    dist = jnp.log1p(expsum)                                  # == log(1 + expsum)

    if needs_mask:
        # Trailing partial tile: rows past total_b contain unspecified data.
        row = (pl.program_id(0) * tile_b
               + jax.lax.broadcasted_iota(jnp.int32, (tile_b, 1), 0))
        valid = row < total_b
        dist = jnp.where(valid, dist, 0.0)
        wsum = jnp.where(valid, wsum, 0.0)

    # One cross-lane/sublane reduction per tile (amortized over TB npairs),
    # written straight to the SMEM output block.
    out_ref[0, 0] = jnp.sum(dist)
    out_ref[0, 1] = jnp.sum(wsum)


def _round_up8(x):
    return max(8, ((int(x) + 7) // 8) * 8)


def npair_loss(batch, l2=0.05, tile_b=None):
    """batch: (B, N, D), N >= 3.  Returns scalar mean(dist) + l2 * mean(wsum)."""
    B, N, D = batch.shape
    assert N >= 3, "need anchor, positive and at least one negative"
    n_neg = N - 2
    itemsize = jnp.dtype(batch.dtype).itemsize

    # --- tile selection.  ~4 MiB of input per grid step keeps the DMA large
    # enough to hide the ~0.35 us/step overhead while fitting comfortably in
    # VMEM on v5e/v6e (128 MiB) and v7x (64 MiB/TC) with double buffering.
    if tile_b is None:
        budget_bytes = 4 * 1024 * 1024
        tile_b = max(8, budget_bytes // (N * D * itemsize))
    if B <= 8:
        tb = B                                   # one tiny tile, no masking
    else:
        budget_tb = max(8, (int(tile_b) // 8) * 8)
        half_tb = _round_up8((B + 1) // 2)       # guarantees >= 2 tiles (v7x megacore)
        tb = min(budget_tb, half_tb)
    num_tiles = (B + tb - 1) // tb
    needs_mask = (B % tb) != 0

    kernel = functools.partial(
        _npair_loss_kernel,
        n_neg=n_neg, total_b=B, tile_b=tb, needs_mask=needs_mask)

    partials = pl.pallas_call(
        kernel,
        out_shape=jax.ShapeDtypeStruct((num_tiles, 2), jnp.float32),
        grid_spec=pltpu.PrefetchScalarGridSpec(
            num_scalar_prefetch=0,
            grid=(num_tiles,),
            in_specs=[
                # Last two block dims equal the full (N, D) extents -> legal even
                # when D is not a multiple of 128; no HBM padding bytes moved.
                pl.BlockSpec((tb, N, D), lambda i: (i, 0, 0)),
            ],
            out_specs=pl.BlockSpec((1, 2), lambda i: (i, 0),
                                   memory_space=pltpu.MemorySpace.SMEM),
        ),
        compiler_params=pltpu.CompilerParams(
            dimension_semantics=("parallel",),   # independent tiles -> 2 TCs on v7x
            vmem_limit_bytes=32 * 1024 * 1024,   # right-sized; leaves headroom on v7x
        ),
    )(batch)

    # Final mean + l2 combine outside the kernel (tiny, done once).
    dist_mean = jnp.sum(partials[:, 0]) / B
    wsum_mean = jnp.sum(partials[:, 1]) / B
    return dist_mean + l2 * wsum_mean


def npair_loss_ref(batch, l2=0.05):
    """Pure-JAX reference matching the PyTorch forward exactly."""
    anchor = batch[:, 0, :]
    positive = batch[:, 1, :]
    negatives = batch[:, 2:, :]
    logits = jnp.einsum('bd,bnd->bn', anchor, negatives - positive[:, None, :])
    dist = jnp.log(1.0 + jnp.sum(jnp.exp(logits), axis=-1))
    wsum = jnp.sum(anchor ** 2 + positive ** 2, axis=-1)
    return jnp.mean(dist) + l2 * jnp.mean(wsum)


if __name__ == "__main__":
    key = jax.random.PRNGKey(0)

    # 4 npairs, each = anchor + positive + 6 negatives, embed_dim = 32
    B, N, D = 4, 8, 32
    batch = 0.1 * jax.random.normal(key, (B, N, D), dtype=jnp.float32)
    loss = jax.block_until_ready(npair_loss(batch, l2=0.05))
    ref = npair_loss_ref(batch, l2=0.05)
    assert jnp.allclose(loss, ref, atol=1e-5, rtol=1e-5), (loss, ref)

    # Exercise the multi-tile + partial-trailing-tile (masked) path.
    B2, N2, D2 = 20, 5, 48
    batch2 = 0.1 * jax.random.normal(jax.random.PRNGKey(1), (B2, N2, D2),
                                     dtype=jnp.float32)
    loss2 = jax.block_until_ready(npair_loss(batch2, l2=0.05))
    ref2 = npair_loss_ref(batch2, l2=0.05)
    assert jnp.allclose(loss2, ref2, atol=1e-5, rtol=1e-5), (loss2, ref2)

    print("KERNEL_OK")
</pallas_src>

<mosaic_0001>
module attributes {stable_mosaic.version = 11 : i64} {
  func.func @_npair_loss_kernel(%arg0: i32, %arg1: memref<4x8x32xf32, #tpu.memory_space<vmem>>, %arg2: memref<1x2xf32, #tpu.memory_space<smem>>) attributes {dimension_semantics = [#tpu.dimension_semantics<parallel>], iteration_bounds = array<i64: 1>, scalar_prefetch = 0 : i64, scratch_operands = 0 : i64, tpu.core_type = #tpu.core_type<tc>, window_params = [{transform_indices = @transform_0, window_bounds = array<i64: 4, 8, 32>}, {transform_indices = @transform_1, window_bounds = array<i64: 1, 2>}]} {
    %c0 = arith.constant 0 : index
    %c0_0 = arith.constant 0 : index
    %c0_1 = arith.constant 0 : index
    %0 = vector.load %arg1[%c0, %c0_0, %c0_1] : memref<4x8x32xf32, #tpu.memory_space<vmem>>, vector<4x1x32xf32>
    %1 = vector.shape_cast %0 : vector<4x1x32xf32> to vector<4x32xf32>
    %c0_2 = arith.constant 0 : index
    %c1 = arith.constant 1 : index
    %c0_3 = arith.constant 0 : index
    %2 = vector.load %arg1[%c0_2, %c1, %c0_3] : memref<4x8x32xf32, #tpu.memory_space<vmem>>, vector<4x1x32xf32>
    %3 = vector.shape_cast %2 : vector<4x1x32xf32> to vector<4x32xf32>
    %4 = arith.mulf %1, %3 : vector<4x32xf32>
    %cst = arith.constant dense<0.000000e+00> : vector<4xf32>
    %5 = vector.multi_reduction <add>, %4, %cst [1] : vector<4x32xf32> to vector<4xf32>
    %6 = vector.shape_cast %5 : vector<4xf32> to vector<4x1xf32>
    %7 = arith.mulf %1, %1 : vector<4x32xf32>
    %8 = arith.mulf %3, %3 : vector<4x32xf32>
    %9 = arith.addf %7, %8 : vector<4x32xf32>
    %cst_4 = arith.constant dense<0.000000e+00> : vector<4xf32>
    %10 = vector.multi_reduction <add>, %9, %cst_4 [1] : vector<4x32xf32> to vector<4xf32>
    %11 = vector.shape_cast %10 : vector<4xf32> to vector<4x1xf32>
    %cst_5 = arith.constant 0.000000e+00 : f32
    %12 = vector.broadcast %cst_5 : f32 to vector<4x1xf32>
    %c0_6 = arith.constant 0 : index
    %c2 = arith.constant 2 : index
    %c0_7 = arith.constant 0 : index
    %13 = vector.load %arg1[%c0_6, %c2, %c0_7] : memref<4x8x32xf32, #tpu.memory_space<vmem>>, vector<4x1x32xf32>
    %14 = vector.shape_cast %13 : vector<4x1x32xf32> to vector<4x32xf32>
    %15 = arith.mulf %1, %14 : vector<4x32xf32>
    %cst_8 = arith.constant dense<0.000000e+00> : vector<4xf32>
    %16 = vector.multi_reduction <add>, %15, %cst_8 [1] : vector<4x32xf32> to vector<4xf32>
    %17 = vector.shape_cast %16 : vector<4xf32> to vector<4x1xf32>
    %18 = arith.subf %17, %6 : vector<4x1xf32>
    %19 = math.exp %18 : vector<4x1xf32>
    %20 = arith.addf %12, %19 : vector<4x1xf32>
    %c0_9 = arith.constant 0 : index
    %c3 = arith.constant 3 : index
    %c0_10 = arith.constant 0 : index
    %21 = vector.load %arg1[%c0_9, %c3, %c0_10] : memref<4x8x32xf32, #tpu.memory_space<vmem>>, vector<4x1x32xf32>
    %22 = vector.shape_cast %21 : vector<4x1x32xf32> to vector<4x32xf32>
    %23 = arith.mulf %1, %22 : vector<4x32xf32>
    %cst_11 = arith.constant dense<0.000000e+00> : vector<4xf32>
    %24 = vector.multi_reduction <add>, %23, %cst_11 [1] : vector<4x32xf32> to vector<4xf32>
    %25 = vector.shape_cast %24 : vector<4xf32> to vector<4x1xf32>
    %26 = arith.subf %25, %6 : vector<4x1xf32>
    %27 = math.exp %26 : vector<4x1xf32>
    %28 = arith.addf %20, %27 : vector<4x1xf32>
    %c0_12 = arith.constant 0 : index
    %c4 = arith.constant 4 : index
    %c0_13 = arith.constant 0 : index
    %29 = vector.load %arg1[%c0_12, %c4, %c0_13] : memref<4x8x32xf32, #tpu.memory_space<vmem>>, vector<4x1x32xf32>
    %30 = vector.shape_cast %29 : vector<4x1x32xf32> to vector<4x32xf32>
    %31 = arith.mulf %1, %30 : vector<4x32xf32>
    %cst_14 = arith.constant dense<0.000000e+00> : vector<4xf32>
    %32 = vector.multi_reduction <add>, %31, %cst_14 [1] : vector<4x32xf32> to vector<4xf32>
    %33 = vector.shape_cast %32 : vector<4xf32> to vector<4x1xf32>
    %34 = arith.subf %33, %6 : vector<4x1xf32>
    %35 = math.exp %34 : vector<4x1xf32>
    %36 = arith.addf %28, %35 : vector<4x1xf32>
    %c0_15 = arith.constant 0 : index
    %c5 = arith.constant 5 : index
    %c0_16 = arith.constant 0 : index
    %37 = vector.load %arg1[%c0_15, %c5, %c0_16] : memref<4x8x32xf32, #tpu.memory_space<vmem>>, vector<4x1x32xf32>
    %38 = vector.shape_cast %37 : vector<4x1x32xf32> to vector<4x32xf32>
    %39 = arith.mulf %1, %38 : vector<4x32xf32>
    %cst_17 = arith.constant dense<0.000000e+00> : vector<4xf32>
    %40 = vector.multi_reduction <add>, %39, %cst_17 [1] : vector<4x32xf32> to vector<4xf32>
    %41 = vector.shape_cast %40 : vector<4xf32> to vector<4x1xf32>
    %42 = arith.subf %41, %6 : vector<4x1xf32>
    %43 = math.exp %42 : vector<4x1xf32>
    %44 = arith.addf %36, %43 : vector<4x1xf32>
    %c0_18 = arith.constant 0 : index
    %c6 = arith.constant 6 : index
    %c0_19 = arith.constant 0 : index
    %45 = vector.load %arg1[%c0_18, %c6, %c0_19] : memref<4x8x32xf32, #tpu.memory_space<vmem>>, vector<4x1x32xf32>
    %46 = vector.shape_cast %45 : vector<4x1x32xf32> to vector<4x32xf32>
    %47 = arith.mulf %1, %46 : vector<4x32xf32>
    %cst_20 = arith.constant dense<0.000000e+00> : vector<4xf32>
    %48 = vector.multi_reduction <add>, %47, %cst_20 [1] : vector<4x32xf32> to vector<4xf32>
    %49 = vector.shape_cast %48 : vector<4xf32> to vector<4x1xf32>
    %50 = arith.subf %49, %6 : vector<4x1xf32>
    %51 = math.exp %50 : vector<4x1xf32>
    %52 = arith.addf %44, %51 : vector<4x1xf32>
    %c0_21 = arith.constant 0 : index
    %c7 = arith.constant 7 : index
    %c0_22 = arith.constant 0 : index
    %53 = vector.load %arg1[%c0_21, %c7, %c0_22] : memref<4x8x32xf32, #tpu.memory_space<vmem>>, vector<4x1x32xf32>
    %54 = vector.shape_cast %53 : vector<4x1x32xf32> to vector<4x32xf32>
    %55 = arith.mulf %1, %54 : vector<4x32xf32>
    %cst_23 = arith.constant dense<0.000000e+00> : vector<4xf32>
    %56 = vector.multi_reduction <add>, %55, %cst_23 [1] : vector<4x32xf32> to vector<4xf32>
    %57 = vector.shape_cast %56 : vector<4xf32> to vector<4x1xf32>
    %58 = arith.subf %57, %6 : vector<4x1xf32>
    %59 = math.exp %58 : vector<4x1xf32>
    %60 = arith.addf %52, %59 : vector<4x1xf32>
    %61 = math.log1p %60 : vector<4x1xf32>
    %62 = vector.shape_cast %61 : vector<4x1xf32> to vector<1x4x1xf32>
    %cst_24 = arith.constant dense<0.000000e+00> : vector<1xf32>
    %63 = vector.multi_reduction <add>, %62, %cst_24 [1, 2] : vector<1x4x1xf32> to vector<1xf32>
    %64 = vector.shape_cast %63 : vector<1xf32> to vector<1x1x1xf32>
    %65 = vector.extract %64[0, 0, 0] : f32 from vector<1x1x1xf32>
    %c0_25 = arith.constant 0 : index
    %c0_26 = arith.constant 0 : index
    %66 = memref.load %arg2[%c0_25, %c0_26] : memref<1x2xf32, #tpu.memory_space<smem>>
    memref.store %65, %arg2[%c0_25, %c0_26] : memref<1x2xf32, #tpu.memory_space<smem>>
    %67 = vector.shape_cast %11 : vector<4x1xf32> to vector<1x4x1xf32>
    %cst_27 = arith.constant dense<0.000000e+00> : vector<1xf32>
    %68 = vector.multi_reduction <add>, %67, %cst_27 [1, 2] : vector<1x4x1xf32> to vector<1xf32>
    %69 = vector.shape_cast %68 : vector<1xf32> to vector<1x1x1xf32>
    %70 = vector.extract %69[0, 0, 0] : f32 from vector<1x1x1xf32>
    %c0_28 = arith.constant 0 : index
    %c1_29 = arith.constant 1 : index
    %71 = memref.load %arg2[%c0_28, %c1_29] : memref<1x2xf32, #tpu.memory_space<smem>>
    memref.store %70, %arg2[%c0_28, %c1_29] : memref<1x2xf32, #tpu.memory_space<smem>>
    return
  }
  func.func @transform_0(%arg0: i32) -> (i32, i32, i32) {
    %c0_i32 = arith.constant 0 : i32
    %c0_i32_0 = arith.constant 0 : i32
    %c0_i32_1 = arith.constant 0 : i32
    return %arg0, %c0_i32, %c0_i32_0 : i32, i32, i32
  }
  func.func @transform_1(%arg0: i32) -> (i32, i32) {
    %c0_i32 = arith.constant 0 : i32
    %c0_i32_0 = arith.constant 0 : i32
    return %arg0, %c0_i32 : i32, i32
  }
}

</mosaic_0001>

<llo_original>
// kernel: tpu_custom_call.1
$region0: #{tpu_custom_call.1}
  #allocation0 [shape = 'u32[]', space=smem, size = 0x4, offset = 0x4, fixed_abs, tag = 'smem constant byte address 0x4 - core index']
  #allocation1 [shape = 'u32[144,128]{1,0:T(1,128)}', space=vmem, size = 0x12000, scoped, tag = 'internal scratch']
  %s0 = inlined_call_operand.hbm [shape: f32[4,8,32], index: 0, kind: input, shape index: {}]
  %s1 = inlined_call_operand.hbm [shape: f32[1,2], index: 1, kind: output, shape index: {}]
  %s2 = sld [smem:[#allocation0]]
  $region18: #{tpu_custom_call.1} parent=0
    _
  %s4 = ssub.s32 1, %s2
  %s5 = scalar_select 0, %s4, %s2
  $region1: #{tpu_custom_call.1} parent=0
    #allocation2 [shape = 'u8[16384]{0}', space=vmem, size = 0x4000, scoped, tag = 'input window, operand 0, single buffered']
    #allocation3 [shape = 's32[1]{0}', space=sflag, size = 0x4, scoped, tag = 'scoped memory for tpu_custom_call.1']
    #allocation4 [shape = 's32[1]{0}', space=sflag, size = 0x4, scoped, tag = 'scoped memory for tpu_custom_call.1']
    #allocation5 [shape = 'u8[512]{0}', space=smem, size = 0x200, scoped, tag = 'output window, operand 0, single buffered']
    %6 = vsyncpa [#allocation3], 0
    %7 = vsyncpa [#allocation4], 0
    // Predicated region
    $region2: #{tpu_custom_call.1} parent=1 // pred_check
      _
    $region3: #{tpu_custom_call.1} parent=1 // pred_check_branch
      %9 = sbr.rel (0) target = $region5
    $region4: #{tpu_custom_call.1} parent=1 // pred_region
      %s11 = ssub.s32 512, 512
      %12 = vsyncadd [#allocation3], %s11
      %s13 = sshll.u32 [#allocation2], 4
      %s14 = int_to_ptr.vmem [resolvable:$true] %s13
      %19 = dma.hbm_to_vmem [thread:$0]  %s0, 512, %s14, [#allocation3], 128, 128, 8
    $region5: #{tpu_custom_call.1} parent=1 // pred_fallthru
      _
    // Predicated region
    $region6: #{tpu_custom_call.1} parent=1 // pred_check
      _
    $region7: #{tpu_custom_call.1} parent=1 // pred_check_branch
      %21 = sbr.rel (0) target = $region9
    $region8: #{tpu_custom_call.1} parent=1 // pred_region
      %22 = dma.done [#allocation3], 512
    $region9: #{tpu_custom_call.1} parent=1 // pred_fallthru
      _
    %v23 = vld [vmem:[#allocation2] sm:$0x1]
    %v24 = vld [vmem:[#allocation2 + $0x8] sm:$0x1]
    %v25 = vld [vmem:[#allocation2 + $0x10] sm:$0x1]
    %v26 = vld [vmem:[#allocation2 + $0x18] sm:$0x1]
    %v27 = vld [vmem:[#allocation2 + $0x1] sm:$0x1]
    %v28 = vld [vmem:[#allocation2 + $0x9] sm:$0x1]
    %v29 = vld [vmem:[#allocation2 + $0x11] sm:$0x1]
    %v30 = vld [vmem:[#allocation2 + $0x19] sm:$0x1]
    %v31 = vmul.f32 %v23, %v27
    %v32 = vmul.f32 %v24, %v28
    %v33 = vmul.f32 %v25, %v29
    %v34 = vmul.f32 %v26, %v30
    %v39 = vrot.slane %v32, 7
    %vm40 = vcmask 1041409
    %v41 = vsel %vm40, %v39, %v31
    %v42 = vrot.slane %v33, 6
    %vm43 = vcmask 1042434
    %v44 = vsel %vm43, %v42, %v41
    %v45 = vrot.slane %v34, 5
    %vm46 = vcmask 1043459
    %v47 = vsel %vm46, %v45, %v44
    %vm49 = vcmask 257024
    %v50 = vsel %vm49, %v47, 0.0
    %51 = vadd.xlane.f32.xlu0 %v50
    %v52 = vpop.xlane.xlu0 %51
    %v53 = vmul.f32 %v23, %v23
    %v54 = vmul.f32 %v24, %v24
    %v55 = vmul.f32 %v25, %v25
    %v56 = vmul.f32 %v26, %v26
    %v57 = vmul.f32 %v27, %v27
    %v58 = vmul.f32 %v28, %v28
    %v59 = vmul.f32 %v29, %v29
    %v60 = vmul.f32 %v30, %v30
    %v61 = vadd.f32 %v53, %v57
    %v62 = vadd.f32 %v54, %v58
    %v63 = vadd.f32 %v55, %v59
    %v64 = vadd.f32 %v56, %v60
    %v69 = vrot.slane %v62, 7
    %v70 = vsel %vm40, %v69, %v61
    %v71 = vrot.slane %v63, 6
    %v72 = vsel %vm43, %v71, %v70
    %v73 = vrot.slane %v64, 5
    %v74 = vsel %vm46, %v73, %v72
    %v76 = vsel %vm49, %v74, 0.0
    %77 = vadd.xlane.f32.xlu0 %v76
    %v78 = vpop.xlane.xlu0 %77
    %v79 = vld [vmem:[#allocation2 + $0x2] sm:$0x1]
    %v80 = vld [vmem:[#allocation2 + $0xa] sm:$0x1]
    %v81 = vld [vmem:[#allocation2 + $0x12] sm:$0x1]
    %v82 = vld [vmem:[#allocation2 + $0x1a] sm:$0x1]
    %v83 = vmul.f32 %v23, %v79
    %v84 = vmul.f32 %v24, %v80
    %v85 = vmul.f32 %v25, %v81
    %v86 = vmul.f32 %v26, %v82
    %v91 = vrot.slane %v84, 7
    %v92 = vsel %vm40, %v91, %v83
    %v93 = vrot.slane %v85, 6
    %v94 = vsel %vm43, %v93, %v92
    %v95 = vrot.slane %v86, 5
    %v96 = vsel %vm46, %v95, %v94
    %v98 = vsel %vm49, %v96, 0.0
    %99 = vadd.xlane.f32.xlu0 %v98
    %v100 = vpop.xlane.xlu0 %99
    %v101 = vsub.f32 %v100, %v52
    %v102 = vmul.f32 %v101, 1.442695
    %v103 = vpow.pop %v102
    %v104 = vadd.f32 %v103, 0.0
    %v105 = vld [vmem:[#allocation2 + $0x3] sm:$0x1]
    %v106 = vld [vmem:[#allocation2 + $0xb] sm:$0x1]
    %v107 = vld [vmem:[#allocation2 + $0x13] sm:$0x1]
    %v108 = vld [vmem:[#allocation2 + $0x1b] sm:$0x1]
    %v109 = vmul.f32 %v23, %v105
    %v110 = vmul.f32 %v24, %v106
    %v111 = vmul.f32 %v25, %v107
    %v112 = vmul.f32 %v26, %v108
    %v117 = vrot.slane %v110, 7
    %v118 = vsel %vm40, %v117, %v109
    %v119 = vrot.slane %v111, 6
    %v120 = vsel %vm43, %v119, %v118
    %v121 = vrot.slane %v112, 5
    %v122 = vsel %vm46, %v121, %v120
    %v124 = vsel %vm49, %v122, 0.0
    %125 = vadd.xlane.f32.xlu0 %v124
    %v126 = vpop.xlane.xlu0 %125
    %v127 = vsub.f32 %v126, %v52
    %v128 = vmul.f32 %v127, 1.442695
    %v129 = vpow.pop %v128
    %v130 = vadd.f32 %v104, %v129
    %v131 = vld [vmem:[#allocation2 + $0x4] sm:$0x1]
    %v132 = vld [vmem:[#allocation2 + $0xc] sm:$0x1]
    %v133 = vld [vmem:[#allocation2 + $0x14] sm:$0x1]
    %v134 = vld [vmem:[#allocation2 + $0x1c] sm:$0x1]
    %v135 = vmul.f32 %v23, %v131
    %v136 = vmul.f32 %v24, %v132
    %v137 = vmul.f32 %v25, %v133
    %v138 = vmul.f32 %v26, %v134
    %v143 = vrot.slane %v136, 7
    %v144 = vsel %vm40, %v143, %v135
    %v145 = vrot.slane %v137, 6
    %v146 = vsel %vm43, %v145, %v144
    %v147 = vrot.slane %v138, 5
    %v148 = vsel %vm46, %v147, %v146
    %v150 = vsel %vm49, %v148, 0.0
    %151 = vadd.xlane.f32.xlu0 %v150
    %v152 = vpop.xlane.xlu0 %151
    %v153 = vsub.f32 %v152, %v52
    %v154 = vmul.f32 %v153, 1.442695
    %v155 = vpow.pop %v154
    %v156 = vadd.f32 %v130, %v155
    %v157 = vld [vmem:[#allocation2 + $0x5] sm:$0x1]
    %v158 = vld [vmem:[#allocation2 + $0xd] sm:$0x1]
    %v159 = vld [vmem:[#allocation2 + $0x15] sm:$0x1]
    %v160 = vld [vmem:[#allocation2 + $0x1d] sm:$0x1]
    %v161 = vmul.f32 %v23, %v157
    %v162 = vmul.f32 %v24, %v158
    %v163 = vmul.f32 %v25, %v159
    %v164 = vmul.f32 %v26, %v160
    %v169 = vrot.slane %v162, 7
    %v170 = vsel %vm40, %v169, %v161
    %v171 = vrot.slane %v163, 6
    %v172 = vsel %vm43, %v171, %v170
    %v173 = vrot.slane %v164, 5
    %v174 = vsel %vm46, %v173, %v172
    %v176 = vsel %vm49, %v174, 0.0
    %177 = vadd.xlane.f32.xlu0 %v176
    %v178 = vpop.xlane.xlu0 %177
    %v179 = vsub.f32 %v178, %v52
    %v180 = vmul.f32 %v179, 1.442695
    %v181 = vpow.pop %v180
    %v182 = vadd.f32 %v156, %v181
    %v183 = vld [vmem:[#allocation2 + $0x6] sm:$0x1]
    %v184 = vld [vmem:[#allocation2 + $0xe] sm:$0x1]
    %v185 = vld [vmem:[#allocation2 + $0x16] sm:$0x1]
    %v186 = vld [vmem:[#allocation2 + $0x1e] sm:$0x1]
    %v187 = vmul.f32 %v23, %v183
    %v188 = vmul.f32 %v24, %v184
    %v189 = vmul.f32 %v25, %v185
    %v190 = vmul.f32 %v26, %v186
    %v195 = vrot.slane %v188, 7
    %v196 = vsel %vm40, %v195, %v187
    %v197 = vrot.slane %v189, 6
    %v198 = vsel %vm43, %v197, %v196
    %v199 = vrot.slane %v190, 5
    %v200 = vsel %vm46, %v199, %v198
    %v202 = vsel %vm49, %v200, 0.0
    %203 = vadd.xlane.f32.xlu0 %v202
    %v204 = vpop.xlane.xlu0 %203
    %v205 = vsub.f32 %v204, %v52
    %v206 = vmul.f32 %v205, 1.442695
    %v207 = vpow.pop %v206
    %v208 = vadd.f32 %v182, %v207
    %v209 = vld [vmem:[#allocation2 + $0x7] sm:$0x1]
    %v210 = vld [vmem:[#allocation2 + $0xf] sm:$0x1]
    %v211 = vld [vmem:[#allocation2 + $0x17] sm:$0x1]
    %v212 = vld [vmem:[#allocation2 + $0x1f] sm:$0x1]
    %v213 = vmul.f32 %v23, %v209
    %v214 = vmul.f32 %v24, %v210
    %v215 = vmul.f32 %v25, %v211
    %v216 = vmul.f32 %v26, %v212
    %v221 = vrot.slane %v214, 7
    %v222 = vsel %vm40, %v221, %v213
    %v223 = vrot.slane %v215, 6
    %v224 = vsel %vm43, %v223, %v222
    %v225 = vrot.slane %v216, 5
    %v226 = vsel %vm46, %v225, %v224
    %v228 = vsel %vm49, %v226, 0.0
    %229 = vadd.xlane.f32.xlu0 %v228
    %v230 = vpop.xlane.xlu0 %229
    %v231 = vsub.f32 %v230, %v52
    %v232 = vmul.f32 %v231, 1.442695
    %v233 = vpow.pop %v232
    %v234 = vadd.f32 %v208, %v233
    %v235 = vadd.f32 %v234, 1.0
    %v236 = vlog2.pop %v235
    %v237 = vmul.f32 %v236, 0.6931472
    %v238 = vmul.f32 -0.5, %v234
    %v239 = vadd.f32 %v238, 1.0
    %v240 = vmul.f32 %v239, %v234
    %v241 = vand.u32 2147483647, %v234
    %vm242 = vcmp.lt.f32.partialorder %v241, 0.0004427343
    %v243 = vsel %vm242, %v240, %v237
    %vm244 = vcmask 3072
    %v245 = vsel %vm244, %v243, 0.0
    %246 = vadd.xlane.f32.xlu0 %v245
    %v247 = vpop.xlane.xlu0 %246
    %v248 = vrot.slane %v247, 4
    %v249 = vadd.f32 %v247, %v248
    %v250 = vrot.slane %v249, 2
    %v251 = vadd.f32 %v249, %v250
    %v252 = vrot.slane %v251, 1
    %v253 = vadd.f32 %v251, %v252
    %s254 = vtos %v253
    %s255 = scalar_lea.smem [#allocation5], 0
    %256 = sst [smem:[%s255]] %s254
    %v257 = vsel %vm244, %v78, 0.0
    %258 = vadd.xlane.f32.xlu0 %v257
    %v259 = vpop.xlane.xlu0 %258
    %v260 = vrot.slane %v259, 4
    %v261 = vadd.f32 %v259, %v260
    %v262 = vrot.slane %v261, 2
    %v263 = vadd.f32 %v261, %v262
    %v264 = vrot.slane %v263, 1
    %v265 = vadd.f32 %v263, %v264
    %s266 = vtos %v265
    %s267 = scalar_lea.smem [#allocation5], 1
    %268 = sst [smem:[%s267]] %s266
    // Predicated region
    $region10: #{tpu_custom_call.1} parent=1 // pred_check
      _
    $region11: #{tpu_custom_call.1} parent=1 // pred_check_branch
      %270 = sbr.rel (0) target = $region13
    $region12: #{tpu_custom_call.1} parent=1 // pred_region
      %s272 = ssub.s32 16, 16
      %273 = vsyncadd [#allocation4], %s272
      %276 = dma.smem_to_hbm [#allocation5], 16, %s1, [#allocation4]
    $region13: #{tpu_custom_call.1} parent=1 // pred_fallthru
      _
    // Predicated region
    $region14: #{tpu_custom_call.1} parent=1 // pred_check
      _
    $region15: #{tpu_custom_call.1} parent=1 // pred_check_branch
      %278 = sbr.rel (0) target = $region17
    $region16: #{tpu_custom_call.1} parent=1 // pred_region
      %279 = dma.done [#allocation4], 16
    $region17: #{tpu_custom_call.1} parent=1 // pred_fallthru
      _
    %280 = sfence
    %281 = vsyncpa [#allocation3], 1
    %282 = vsyncpa [#allocation4], 1

</llo_original>
